<compile_context>
chip_gen: v7x
topology: tpu7x:2x2x1
jax: 0.10.0
libtpu: 0.0.40
codegen_flags: <defaults>
</compile_context>

<pallas_src>
import jax
import jax.numpy as jnp
from jax.experimental import pallas as pl
from jax.experimental.pallas import tpu as pltpu


def conv1x1_sub_kernel(x_ref, w_ref, b_ref, o_ref):
    # x_ref: (Cin,  Mp) VMEM  -- padded input pixels, spatial positions on lanes
    # w_ref: (Cout, Cin) VMEM -- 1x1 conv weights
    # b_ref: (Cout, 1)  VMEM  -- bias - sub_scalar, folded on host
    # o_ref: (Cout, Mp) VMEM
    cin = x_ref.shape[0]
    # Dense (Cout, Mp) accumulation: (Cout,1) lane-broadcast weight column times
    # (1,Mp) sublane-broadcast input channel -> full-occupancy VPU FMAs.
    acc = b_ref[...] + w_ref[:, 0:1] * x_ref[0:1, :]
    for k in range(1, cin):
        acc = acc + w_ref[:, k:k + 1] * x_ref[k:k + 1, :]
    o_ref[...] = acc  # single dense, unmasked store


def model_forward(x_nchw, weight, bias, sub_scalar):
    """x_nchw: (1, 3, 31, 31) f32 -> (1, 8, 33, 33) f32.

    Equivalent to Conv2d(3, 8, kernel_size=1, stride=1, padding=1)(x) - sub_scalar.
    """
    N, Cin, H, W = x_nchw.shape
    assert N == 1, "flattened (Cin, Hp*Wp) layout is only valid for N == 1"
    Cout = weight.shape[0]
    pad = 1
    Hp, Wp = H + 2 * pad, W + 2 * pad
    M = Hp * Wp                       # 1089
    Mp = ((M + 127) // 128) * 128     # lane-pad to full vregs: 1152

    # Zero-pad spatial dims, flatten to (Cin, M), lane-pad to (Cin, Mp).  XLA fuses
    # both pads + reshape into one small fusion feeding the custom call.
    # TODO(synk): this pad could be fused into the kernel via a strided
    # make_async_copy into a zeroed VMEM scratch (saves one dispatch + one ~13 KB
    # HBM round trip); kept on host for simplicity/robustness.
    x_p = jnp.pad(x_nchw.astype(jnp.float32), ((0, 0), (0, 0), (pad, pad), (pad, pad)))
    x_mat = jnp.pad(x_p.reshape(Cin, M), ((0, 0), (0, Mp - M)))          # (3, 1152)

    w_mat = weight.reshape(Cout, Cin).astype(jnp.float32)                # (8, 3)
    b_eff = (bias.reshape(Cout, 1) - sub_scalar.reshape(())).astype(jnp.float32)  # (8, 1)

    out_mat = pl.pallas_call(
        conv1x1_sub_kernel,
        out_shape=jax.ShapeDtypeStruct((Cout, Mp), jnp.float32),
        in_specs=[
            pl.BlockSpec(memory_space=pltpu.MemorySpace.VMEM),   # x     (Cin, Mp)
            pl.BlockSpec(memory_space=pltpu.MemorySpace.VMEM),   # w     (Cout, Cin)
            pl.BlockSpec(memory_space=pltpu.MemorySpace.VMEM),   # b_eff (Cout, 1)
        ],
        out_specs=pl.BlockSpec(memory_space=pltpu.MemorySpace.VMEM),
        cost_estimate=pl.CostEstimate(
            flops=2 * Cout * Cin * M,
            transcendentals=0,
            bytes_accessed=(Cin + Cout) * Mp * 4,
        ),
    )(x_mat, w_mat, b_eff)

    # (Cout, :M) is exactly the flattened NCHW output.
    return out_mat[:, :M].reshape(N, Cout, Hp, Wp)


if __name__ == "__main__":
    key = jax.random.PRNGKey(0)
    k_x, k_w, k_b, k_s = jax.random.split(key, 4)

    # Input consistent with the module: (1, 3, 31, 31)
    x = jax.random.normal(k_x, (1, 3, 31, 31), dtype=jnp.float32)

    # Deterministic "Conv2d(3, 8, 1)" parameters
    weight = jax.random.normal(k_w, (8, 3, 1, 1), dtype=jnp.float32) * 0.1
    bias = jax.random.normal(k_b, (8,), dtype=jnp.float32) * 0.1
    # TODO(synk): torch.randn(1) is drawn per-forward in the PyTorch module;
    # here it is a fixed deterministic input to keep the kernel pure.
    sub_scalar = jax.random.normal(k_s, (1,), dtype=jnp.float32)

    out = model_forward(x, weight, bias, sub_scalar)
    jax.block_until_ready(out)

    # Cross-check against a plain-JAX reference
    x_pad = jnp.pad(x, ((0, 0), (0, 0), (1, 1), (1, 1)))
    ref = (jnp.einsum("ncij,oc->noij", x_pad, weight.reshape(8, 3))
           + bias[None, :, None, None] - sub_scalar[0])
    assert out.shape == (1, 8, 33, 33)
    assert jnp.allclose(out, ref, atol=1e-5), "mismatch vs reference"

    print("KERNEL_OK")
</pallas_src>

<mosaic_0001>
module attributes {stable_mosaic.version = 11 : i64} {
  func.func @conv1x1_sub_kernel(%arg0: memref<3x1152xf32, #tpu.memory_space<vmem>>, %arg1: memref<8x3xf32, #tpu.memory_space<vmem>>, %arg2: memref<8x1xf32, #tpu.memory_space<vmem>>, %arg3: memref<8x1152xf32, #tpu.memory_space<vmem>>) attributes {dimension_semantics = [], scalar_prefetch = 0 : i64, scratch_operands = 0 : i64, tpu.core_type = #tpu.core_type<tc>} {
    %c0 = arith.constant 0 : index
    %c0_0 = arith.constant 0 : index
    %0 = vector.load %arg2[%c0, %c0_0] : memref<8x1xf32, #tpu.memory_space<vmem>>, vector<8x1xf32>
    %c0_1 = arith.constant 0 : index
    %c0_2 = arith.constant 0 : index
    %1 = vector.load %arg1[%c0_1, %c0_2] : memref<8x3xf32, #tpu.memory_space<vmem>>, vector<8x1xf32>
    %c0_3 = arith.constant 0 : index
    %c0_4 = arith.constant 0 : index
    %2 = vector.load %arg0[%c0_3, %c0_4] : memref<3x1152xf32, #tpu.memory_space<vmem>>, vector<1x1152xf32>
    %3 = vector.broadcast %1 : vector<8x1xf32> to vector<8x1152xf32>
    %4 = vector.broadcast %2 : vector<1x1152xf32> to vector<8x1152xf32>
    %5 = arith.mulf %3, %4 : vector<8x1152xf32>
    %6 = vector.broadcast %0 : vector<8x1xf32> to vector<8x1152xf32>
    %7 = arith.addf %6, %5 : vector<8x1152xf32>
    %c0_5 = arith.constant 0 : index
    %c1 = arith.constant 1 : index
    %8 = vector.load %arg1[%c0_5, %c1] : memref<8x3xf32, #tpu.memory_space<vmem>>, vector<8x1xf32>
    %c1_6 = arith.constant 1 : index
    %c0_7 = arith.constant 0 : index
    %9 = vector.load %arg0[%c1_6, %c0_7] : memref<3x1152xf32, #tpu.memory_space<vmem>>, vector<1x1152xf32>
    %10 = vector.broadcast %8 : vector<8x1xf32> to vector<8x1152xf32>
    %11 = vector.broadcast %9 : vector<1x1152xf32> to vector<8x1152xf32>
    %12 = arith.mulf %10, %11 : vector<8x1152xf32>
    %13 = arith.addf %7, %12 : vector<8x1152xf32>
    %c0_8 = arith.constant 0 : index
    %c2 = arith.constant 2 : index
    %14 = vector.load %arg1[%c0_8, %c2] : memref<8x3xf32, #tpu.memory_space<vmem>>, vector<8x1xf32>
    %c2_9 = arith.constant 2 : index
    %c0_10 = arith.constant 0 : index
    %15 = vector.load %arg0[%c2_9, %c0_10] : memref<3x1152xf32, #tpu.memory_space<vmem>>, vector<1x1152xf32>
    %16 = vector.broadcast %14 : vector<8x1xf32> to vector<8x1152xf32>
    %17 = vector.broadcast %15 : vector<1x1152xf32> to vector<8x1152xf32>
    %18 = arith.mulf %16, %17 : vector<8x1152xf32>
    %19 = arith.addf %13, %18 : vector<8x1152xf32>
    %c0_11 = arith.constant 0 : index
    %c0_12 = arith.constant 0 : index
    %20 = vector.load %arg3[%c0_11, %c0_12] : memref<8x1152xf32, #tpu.memory_space<vmem>>, vector<8x1152xf32>
    tpu.vector_store %arg3[%c0_11, %c0_12], %19 {strides = array<i32>} : memref<8x1152xf32, #tpu.memory_space<vmem>>, vector<8x1152xf32>,
    return
  }
}

</mosaic_0001>

<llo_original>
// kernel: tpu_custom_call.1
$region0: #{tpu_custom_call.1}
  #allocation0 [shape = 'u32[]', space=smem, size = 0x4, offset = 0x4, fixed_abs, tag = 'smem constant byte address 0x4 - core index']
  #allocation1 [shape = 'u32[144,128]{1,0:T(1,128)}', space=vmem, size = 0x12000, scoped, tag = 'internal scratch']
  %s0 = inlined_call_operand.hbm [shape: f32[3,1152], index: 0, kind: input, shape index: {}]
  %s1 = inlined_call_operand.vmem [shape: f32[8,3], index: 1, kind: input, shape index: {}]
  %s2 = inlined_call_operand.vmem [shape: f32[8,1], index: 2, kind: input, shape index: {}]
  %s3 = inlined_call_operand.hbm [shape: f32[8,1152], index: 3, kind: output, shape index: {}]
  %s4 = sld [smem:[#allocation0]]
  $region26: #{tpu_custom_call.1} parent=0
    _
  %s6 = ssub.s32 1, %s4
  %s7 = scalar_select 0, %s6, %s4
  $region1: #{tpu_custom_call.1} parent=0
    #allocation2 [shape = 'u8[18432]{0}', space=vmem, size = 0x4800, scoped, tag = 'input window, operand 0, single buffered']
    #allocation3 [shape = 's32[1]{0}', space=sflag, size = 0x4, scoped, tag = 'scoped memory for tpu_custom_call.1']
    #allocation4 [shape = 's32[1]{0}', space=sflag, size = 0x4, scoped, tag = 'scoped memory for tpu_custom_call.1']
    #allocation5 [shape = 'u8[36864]{0}', space=vmem, size = 0x9000, scoped, tag = 'output window, operand 0, single buffered']
    %8 = vsyncpa [#allocation3], 0
    %9 = vsyncpa [#allocation4], 0
    // Predicated region
    $region2: #{tpu_custom_call.1} parent=1 // pred_check
      _
    $region3: #{tpu_custom_call.1} parent=1 // pred_check_branch
      %11 = sbr.rel (0) target = $region5
    $region4: #{tpu_custom_call.1} parent=1 // pred_region
      %s13 = ssub.s32 576, 576
      %14 = vsyncadd [#allocation3], %s13
      %s16 = sshll.u32 [#allocation2], 4
      %s17 = int_to_ptr.vmem [resolvable:$true] %s16
      %19 = dma.hbm_to_vmem [thread:$0]  %s0, 576, %s17, [#allocation3]
    $region5: #{tpu_custom_call.1} parent=1 // pred_fallthru
      _
    // Predicated region
    $region6: #{tpu_custom_call.1} parent=1 // pred_check
      _
    $region7: #{tpu_custom_call.1} parent=1 // pred_check_branch
      %21 = sbr.rel (0) target = $region9
    $region8: #{tpu_custom_call.1} parent=1 // pred_region
      _
    $region9: #{tpu_custom_call.1} parent=1 // pred_fallthru
      _
    // Predicated region
    $region10: #{tpu_custom_call.1} parent=1 // pred_check
      _
    $region11: #{tpu_custom_call.1} parent=1 // pred_check_branch
      %23 = sbr.rel (0) target = $region13
    $region12: #{tpu_custom_call.1} parent=1 // pred_region
      _
    $region13: #{tpu_custom_call.1} parent=1 // pred_fallthru
      _
    // Predicated region
    $region14: #{tpu_custom_call.1} parent=1 // pred_check
      _
    $region15: #{tpu_custom_call.1} parent=1 // pred_check_branch
      %25 = sbr.rel (0) target = $region17
    $region16: #{tpu_custom_call.1} parent=1 // pred_region
      %26 = dma.done [#allocation3], 576
    $region17: #{tpu_custom_call.1} parent=1 // pred_fallthru
      _
    %v27 = vld [vmem:[%s2] sm:$0xff]
    %v28 = vld [vmem:[%s1] sm:$0xff]
    %v29 = vld [vmem:[#allocation2] ss:$4 sm:$0xff]
    %s30 = scalar_lea.vmem [#allocation2], 32
    %v31 = vld [vmem:[%s30] ss:$4 sm:$0x1]
    %33 = vset.pattern.permute.xlu0 0
    %34 = vperm.xlu0 %33, %v28
    %v35 = vpop.permute.xlu0 %34
    %v39 = vlaneseq
    %v40 = vshrl.u32 %v39, 7
    %v41 = vsub.s32 0, %v40
    %v42 = vrot.slane %v29, %v41
    %v43 = vlaneseq
    %v44 = vshrl.u32 %v43, 7
    %v45 = vsub.s32 1, %v44
    %v46 = vrot.slane %v29, %v45
    %v47 = vlaneseq
    %v48 = vshrl.u32 %v47, 7
    %v49 = vsub.s32 2, %v48
    %v50 = vrot.slane %v29, %v49
    %v51 = vlaneseq
    %v52 = vshrl.u32 %v51, 7
    %v53 = vsub.s32 3, %v52
    %v54 = vrot.slane %v29, %v53
    %v55 = vlaneseq
    %v56 = vshrl.u32 %v55, 7
    %v57 = vsub.s32 4, %v56
    %v58 = vrot.slane %v29, %v57
    %v59 = vlaneseq
    %v60 = vshrl.u32 %v59, 7
    %v61 = vsub.s32 5, %v60
    %v62 = vrot.slane %v29, %v61
    %v63 = vlaneseq
    %v64 = vshrl.u32 %v63, 7
    %v65 = vsub.s32 6, %v64
    %v66 = vrot.slane %v29, %v65
    %v67 = vlaneseq
    %v68 = vshrl.u32 %v67, 7
    %v69 = vsub.s32 7, %v68
    %v70 = vrot.slane %v29, %v69
    %v71 = vlaneseq
    %v72 = vshrl.u32 %v71, 7
    %v73 = vsub.s32 0, %v72
    %v74 = vrot.slane %v31, %v73
    %v84 = vmul.f32 %v35, %v42
    %v85 = vmul.f32 %v35, %v46
    %v86 = vmul.f32 %v35, %v50
    %v87 = vmul.f32 %v35, %v54
    %v88 = vmul.f32 %v35, %v58
    %v89 = vmul.f32 %v35, %v62
    %v90 = vmul.f32 %v35, %v66
    %v91 = vmul.f32 %v35, %v70
    %v92 = vmul.f32 %v35, %v74
    %94 = vset.pattern.permute.xlu0 0
    %95 = vperm.xlu0 %94, %v27
    %v96 = vpop.permute.xlu0 %95
    %v98 = vadd.f32 %v96, %v84
    %v99 = vadd.f32 %v96, %v85
    %v100 = vadd.f32 %v96, %v86
    %v101 = vadd.f32 %v96, %v87
    %v102 = vadd.f32 %v96, %v88
    %v103 = vadd.f32 %v96, %v89
    %v104 = vadd.f32 %v96, %v90
    %v105 = vadd.f32 %v96, %v91
    %v106 = vadd.f32 %v96, %v92
    %s107 = scalar_lea.vmem [#allocation2], 1
    %v108 = vld [vmem:[%s107] ss:$4 sm:$0xff]
    %s109 = scalar_lea.vmem [#allocation2], 33
    %v110 = vld [vmem:[%s109] ss:$4 sm:$0x1]
    %111 = vset.pattern.permute.xlu0 1
    %112 = vperm.xlu0 %111, %v28
    %v113 = vpop.permute.xlu0 %112
    %v117 = vlaneseq
    %v118 = vshrl.u32 %v117, 7
    %v119 = vsub.s32 0, %v118
    %v120 = vrot.slane %v108, %v119
    %v121 = vlaneseq
    %v122 = vshrl.u32 %v121, 7
    %v123 = vsub.s32 1, %v122
    %v124 = vrot.slane %v108, %v123
    %v125 = vlaneseq
    %v126 = vshrl.u32 %v125, 7
    %v127 = vsub.s32 2, %v126
    %v128 = vrot.slane %v108, %v127
    %v129 = vlaneseq
    %v130 = vshrl.u32 %v129, 7
    %v131 = vsub.s32 3, %v130
    %v132 = vrot.slane %v108, %v131
    %v133 = vlaneseq
    %v134 = vshrl.u32 %v133, 7
    %v135 = vsub.s32 4, %v134
    %v136 = vrot.slane %v108, %v135
    %v137 = vlaneseq
    %v138 = vshrl.u32 %v137, 7
    %v139 = vsub.s32 5, %v138
    %v140 = vrot.slane %v108, %v139
    %v141 = vlaneseq
    %v142 = vshrl.u32 %v141, 7
    %v143 = vsub.s32 6, %v142
    %v144 = vrot.slane %v108, %v143
    %v145 = vlaneseq
    %v146 = vshrl.u32 %v145, 7
    %v147 = vsub.s32 7, %v146
    %v148 = vrot.slane %v108, %v147
    %v149 = vlaneseq
    %v150 = vshrl.u32 %v149, 7
    %v151 = vsub.s32 0, %v150
    %v152 = vrot.slane %v110, %v151
    %v162 = vmul.f32 %v113, %v120
    %v163 = vmul.f32 %v113, %v124
    %v164 = vmul.f32 %v113, %v128
    %v165 = vmul.f32 %v113, %v132
    %v166 = vmul.f32 %v113, %v136
    %v167 = vmul.f32 %v113, %v140
    %v168 = vmul.f32 %v113, %v144
    %v169 = vmul.f32 %v113, %v148
    %v170 = vmul.f32 %v113, %v152
    %v171 = vadd.f32 %v98, %v162
    %v172 = vadd.f32 %v99, %v163
    %v173 = vadd.f32 %v100, %v164
    %v174 = vadd.f32 %v101, %v165
    %v175 = vadd.f32 %v102, %v166
    %v176 = vadd.f32 %v103, %v167
    %v177 = vadd.f32 %v104, %v168
    %v178 = vadd.f32 %v105, %v169
    %v179 = vadd.f32 %v106, %v170
    %s180 = scalar_lea.vmem [#allocation2], 2
    %v181 = vld [vmem:[%s180] ss:$4 sm:$0xff]
    %s182 = scalar_lea.vmem [#allocation2], 34
    %v183 = vld [vmem:[%s182] ss:$4 sm:$0x1]
    %184 = vset.pattern.permute.xlu0 2
    %185 = vperm.xlu0 %184, %v28
    %v186 = vpop.permute.xlu0 %185
    %v190 = vlaneseq
    %v191 = vshrl.u32 %v190, 7
    %v192 = vsub.s32 0, %v191
    %v193 = vrot.slane %v181, %v192
    %v194 = vlaneseq
    %v195 = vshrl.u32 %v194, 7
    %v196 = vsub.s32 1, %v195
    %v197 = vrot.slane %v181, %v196
    %v198 = vlaneseq
    %v199 = vshrl.u32 %v198, 7
    %v200 = vsub.s32 2, %v199
    %v201 = vrot.slane %v181, %v200
    %v202 = vlaneseq
    %v203 = vshrl.u32 %v202, 7
    %v204 = vsub.s32 3, %v203
    %v205 = vrot.slane %v181, %v204
    %v206 = vlaneseq
    %v207 = vshrl.u32 %v206, 7
    %v208 = vsub.s32 4, %v207
    %v209 = vrot.slane %v181, %v208
    %v210 = vlaneseq
    %v211 = vshrl.u32 %v210, 7
    %v212 = vsub.s32 5, %v211
    %v213 = vrot.slane %v181, %v212
    %v214 = vlaneseq
    %v215 = vshrl.u32 %v214, 7
    %v216 = vsub.s32 6, %v215
    %v217 = vrot.slane %v181, %v216
    %v218 = vlaneseq
    %v219 = vshrl.u32 %v218, 7
    %v220 = vsub.s32 7, %v219
    %v221 = vrot.slane %v181, %v220
    %v222 = vlaneseq
    %v223 = vshrl.u32 %v222, 7
    %v224 = vsub.s32 0, %v223
    %v225 = vrot.slane %v183, %v224
    %v235 = vmul.f32 %v186, %v193
    %v236 = vmul.f32 %v186, %v197
    %v237 = vmul.f32 %v186, %v201
    %v238 = vmul.f32 %v186, %v205
    %v239 = vmul.f32 %v186, %v209
    %v240 = vmul.f32 %v186, %v213
    %v241 = vmul.f32 %v186, %v217
    %v242 = vmul.f32 %v186, %v221
    %v243 = vmul.f32 %v186, %v225
    %v244 = vadd.f32 %v171, %v235
    %v245 = vadd.f32 %v172, %v236
    %v246 = vadd.f32 %v173, %v237
    %v247 = vadd.f32 %v174, %v238
    %v248 = vadd.f32 %v175, %v239
    %v249 = vadd.f32 %v176, %v240
    %v250 = vadd.f32 %v177, %v241
    %v251 = vadd.f32 %v178, %v242
    %v252 = vadd.f32 %v179, %v243
    %253 = vst [vmem:[#allocation5] sm:$0xff] %v244
    %254 = vst [vmem:[#allocation5 + $0x8] sm:$0xff] %v245
    %255 = vst [vmem:[#allocation5 + $0x10] sm:$0xff] %v246
    %256 = vst [vmem:[#allocation5 + $0x18] sm:$0xff] %v247
    %257 = vst [vmem:[#allocation5 + $0x20] sm:$0xff] %v248
    %258 = vst [vmem:[#allocation5 + $0x28] sm:$0xff] %v249
    %259 = vst [vmem:[#allocation5 + $0x30] sm:$0xff] %v250
    %260 = vst [vmem:[#allocation5 + $0x38] sm:$0xff] %v251
    %261 = vst [vmem:[#allocation5 + $0x40] sm:$0xff] %v252
    // Predicated region
    $region18: #{tpu_custom_call.1} parent=1 // pred_check
      _
    $region19: #{tpu_custom_call.1} parent=1 // pred_check_branch
      %263 = sbr.rel (0) target = $region21
    $region20: #{tpu_custom_call.1} parent=1 // pred_region
      %s265 = ssub.s32 1152, 1152
      %266 = vsyncadd [#allocation4], %s265
      %s268 = sshll.u32 [#allocation5], 4
      %s269 = int_to_ptr.vmem [resolvable:$true] %s268
      %271 = dma.vmem_to_hbm [thread:$0]  %s269, 1152, %s3, [#allocation4]
    $region21: #{tpu_custom_call.1} parent=1 // pred_fallthru
      _
    // Predicated region
    $region22: #{tpu_custom_call.1} parent=1 // pred_check
      _
    $region23: #{tpu_custom_call.1} parent=1 // pred_check_branch
      %273 = sbr.rel (0) target = $region25
    $region24: #{tpu_custom_call.1} parent=1 // pred_region
      %274 = dma.done [#allocation4], 1152
    $region25: #{tpu_custom_call.1} parent=1 // pred_fallthru
      _
    %275 = vsyncpa [#allocation3], 1
    %276 = vsyncpa [#allocation4], 1

</llo_original>
